<compile_context>
chip_gen: v7x
topology: tpu7x:2x2x1
jax: 0.10.0
libtpu: 0.0.40
codegen_flags: <defaults>
</compile_context>

<pallas_src>
import jax
import jax.numpy as jnp
from jax.experimental import pallas as pl
from jax.experimental.pallas import tpu as pltpu


def _attention_kernel(x_ref, w_ref, o_ref, acc_ref):
    # x_ref:   (Bt, S, Dt) input tile in its native dtype
    # w_ref:   (1, Dt)     lane-major effective (weight-normed) linear weight, f32
    # o_ref:   (Bt, S)     softmax over the S (lane) axis, f32
    # acc_ref: (Bt, S)     f32 logits accumulator across the feature grid axis
    k = pl.program_id(1)

    @pl.when(k == 0)
    def _():
        acc_ref[...] = jnp.zeros_like(acc_ref)

    # Logits via VPU multiply + lane reduce over this feature slice.  Upcast in-VMEM
    # (bf16 inputs halve HBM traffic; the convert is free relative to the DMA).
    x = x_ref[...].astype(jnp.float32)                  # (Bt, S, Dt)
    w = w_ref[...]                                      # (1, Dt) f32
    acc_ref[...] += jnp.sum(x * w[None, :, :], axis=-1)  # (Bt, S)

    @pl.when(k == pl.num_programs(1) - 1)
    def _():
        logits = acc_ref[...]                            # (Bt, S)
        m = jnp.max(logits, axis=-1, keepdims=True)      # (Bt, 1)
        e = jnp.exp(logits - m)                          # (Bt, S)
        denom = jnp.sum(e, axis=-1, keepdims=True)       # (Bt, 1)
        # Exact division: the op is HBM-bound, so this costs nothing and rows sum to 1
        # to f32 precision (no relaxed tolerances downstream).
        o_ref[...] = (e / denom).astype(o_ref.dtype)


def _vmem_capacity_bytes():
    try:
        return int(pltpu.get_tpu_info().vmem_capacity_bytes)
    except Exception:
        return 64 << 20  # conservative: v7x per-TensorCore VMEM


def _choose_tiles(B, S, D, target_bytes):
    """Pick (Bt, Dt).

    Constraints:
      * Output block is (Bt, S): Bt must be a multiple of 8 dividing B, or B itself.
      * Feature blocks along the reduction grid axis must be multiples of 128 that
        divide D exactly, or the full D.
    Preferences:
      * Largest feature tile that keeps a minimal batch tile within the byte budget
        (fewer reduction passes).
      * Largest batch tile within budget, but keep >=2 batch grid steps when possible
        so the "parallel" axis can shard across v7x's two TensorCores.
    """
    bts = [b for b in range(8, B + 1, 8) if B % b == 0] or [B]
    dts = [d for d in range(128, D, 128) if D % d == 0] + [D]

    def tile_bytes(bt, dt):
        return bt * S * dt * 4  # f32-conservative (covers in-kernel upcast temporaries)

    dt = min(dts)
    for d in sorted(dts, reverse=True):
        if tile_bytes(min(bts), d) <= target_bytes:
            dt = d
            break
    # (If even the smallest legal tile exceeds the budget we still proceed; the
    #  vmem_limit below is sized from the real footprint.  See S-blocking TODO.)

    fitting = [b for b in bts if tile_bytes(b, dt) <= target_bytes] or [min(bts)]
    multi_step = [b for b in fitting if B // b >= 2]
    bt = max(multi_step) if multi_step else max(fitting)
    return bt, dt


def _vmem_limit_bytes(Bt, S, Dt, x_itemsize, vmem_cap):
    # Double-buffered x tile + weight + output slab + accumulator scratch + margin
    # for Mosaic internal scratch / semaphores.  Never ask for all of physical VMEM
    # (v7x has only 64 MiB per TensorCore).
    need = (2 * Bt * S * Dt * x_itemsize      # x double buffer
            + 2 * Dt * 4                      # weight double buffer
            + 2 * Bt * S * 4                  # output double buffer
            + Bt * S * 4                      # logits accumulator scratch
            + (8 << 20))                      # margin
    ceiling = (vmem_cap * 3) // 4
    return int(max(16 << 20, min(need, ceiling)))


def attention_forward(x, v, g, b=None):
    """x: (B, S, D) float32/bfloat16. v: (1, D), g: scalar, b: (1,) — weight_norm params.

    The bias is not passed to the kernel — softmax over S cancels a constant added to
    every logit of a batch row, so dropping it is mathematically exact.
    Returns softmax attention weights of shape (B, S, 1) in float32.
    """
    B, S, D = x.shape

    # weight_norm(dim=None): W = g * V / ||V||_F, kept lane-major as (1, D), f32.
    w_eff = (g * v.reshape(1, D) / jnp.linalg.norm(v)).astype(jnp.float32)

    vmem_cap = _vmem_capacity_bytes()
    target_bytes = max(2 << 20, vmem_cap // 8)   # ~8 MiB on v7x, ~16 MiB on v5e/v6e
    Bt, Dt = _choose_tiles(B, S, D, target_bytes)
    grid = (B // Bt, D // Dt)

    out = pl.pallas_call(
        _attention_kernel,
        out_shape=jax.ShapeDtypeStruct((B, S), jnp.float32),
        grid_spec=pltpu.PrefetchScalarGridSpec(
            num_scalar_prefetch=0,
            grid=grid,
            in_specs=[
                # x in its native dtype, no padding: last block dims equal full S / a
                # 128-multiple divisor of D (or full D), so the layout stays legal.
                pl.BlockSpec((Bt, S, Dt), lambda i, k: (i, 0, k)),
                pl.BlockSpec((1, Dt), lambda i, k: (0, k)),       # shared lane-major weight
            ],
            out_specs=pl.BlockSpec((Bt, S), lambda i, k: (i, 0)),  # lane-dense output slab
            scratch_shapes=[pltpu.VMEM((Bt, S), jnp.float32)],     # logits accumulator
        ),
        compiler_params=pltpu.CompilerParams(
            dimension_semantics=("parallel", "arbitrary"),
            vmem_limit_bytes=_vmem_limit_bytes(Bt, S, Dt, x.dtype.itemsize, vmem_cap),
        ),
    )(x, w_eff)

    return out.reshape(B, S, 1)


def attention_reference(x, v, g, b):
    """Pure-JAX reference matching the PyTorch module (eval mode), bias included."""
    w_eff = g * v / jnp.linalg.norm(v)                   # (1, D)
    logits = jnp.einsum("bsd,od->bso", x.astype(jnp.float32), w_eff) + b  # (B, S, 1)
    return jax.nn.softmax(logits, axis=1)


if __name__ == "__main__":
    B, S, D = 2, 8, 32

    key = jax.random.PRNGKey(0)
    kx, kv, kg, kb = jax.random.split(key, 4)

    x = jax.random.normal(kx, (B, S, D), dtype=jnp.float32)
    # Deterministic synthetic parameters (shapes per nn.Linear(D, 1) + weight_norm(dim=None)).
    v = jax.random.normal(kv, (1, D), dtype=jnp.float32) * 0.1        # weight_v
    g = jnp.abs(jax.random.normal(kg, (), dtype=jnp.float32)) + 0.5   # weight_g (scalar)
    b = jax.random.normal(kb, (1,), dtype=jnp.float32) * 0.01         # bias

    out = attention_forward(x, v, g, b)
    out = jax.block_until_ready(out)

    ref = attention_reference(x, v, g, b)
    assert out.shape == (B, S, 1), out.shape
    assert jnp.allclose(out, ref, atol=1e-5, rtol=1e-5), float(jnp.max(jnp.abs(out - ref)))
    # softmax over dim=1 sums to 1 (exact division in the kernel -> tight tolerance)
    assert jnp.allclose(jnp.sum(out, axis=1), 1.0, atol=1e-5)

    # bf16 input path: half the HBM traffic, upcast happens in-kernel.
    out_bf16 = jax.block_until_ready(attention_forward(x.astype(jnp.bfloat16), v, g, b))
    assert out_bf16.shape == (B, S, 1)
    assert jnp.allclose(jnp.sum(out_bf16, axis=1), 1.0, atol=1e-5)

    print("KERNEL_OK")
</pallas_src>

<mosaic_0001>
module attributes {stable_mosaic.version = 11 : i64} {
  func.func @_attention_kernel(%arg0: i32, %arg1: i32, %arg2: memref<2x8x32xf32, #tpu.memory_space<vmem>>, %arg3: memref<1x32xf32, #tpu.memory_space<vmem>>, %arg4: memref<2x8xf32, #tpu.memory_space<vmem>>, %arg5: memref<2x8xf32, #tpu.memory_space<vmem>>) attributes {dimension_semantics = [#tpu.dimension_semantics<parallel>, #tpu.dimension_semantics<arbitrary>], iteration_bounds = array<i64: 1, 1>, scalar_prefetch = 0 : i64, scratch_operands = 1 : i64, tpu.core_type = #tpu.core_type<tc>, window_params = [{transform_indices = @transform_0, window_bounds = array<i64: 2, 8, 32>}, {transform_indices = @transform_1, window_bounds = array<i64: 1, 32>}, {transform_indices = @transform_2, window_bounds = array<i64: 2, 8>}]} {
    %c0_i32 = arith.constant 0 : i32
    %0 = arith.cmpi eq, %arg1, %c0_i32 : i32
    %1 = arith.extui %0 : i1 to i32
    %c0_i32_0 = arith.constant 0 : i32
    %2 = arith.cmpi ne, %1, %c0_i32_0 : i32
    scf.if %2 {
      %cst_11 = arith.constant 0.000000e+00 : f32
      %15 = vector.broadcast %cst_11 : f32 to vector<2x8xf32>
      %c0_12 = arith.constant 0 : index
      %c0_13 = arith.constant 0 : index
      %16 = vector.load %arg5[%c0_12, %c0_13] : memref<2x8xf32, #tpu.memory_space<vmem>>, vector<2x8xf32>
      tpu.vector_store %arg5[%c0_12, %c0_13], %15 {strides = array<i32>} : memref<2x8xf32, #tpu.memory_space<vmem>>, vector<2x8xf32>,
    } else {
    }
    %c0 = arith.constant 0 : index
    %c0_1 = arith.constant 0 : index
    %c0_2 = arith.constant 0 : index
    %3 = vector.load %arg2[%c0, %c0_1, %c0_2] : memref<2x8x32xf32, #tpu.memory_space<vmem>>, vector<2x8x32xf32>
    %c0_3 = arith.constant 0 : index
    %c0_4 = arith.constant 0 : index
    %4 = vector.load %arg3[%c0_3, %c0_4] : memref<1x32xf32, #tpu.memory_space<vmem>>, vector<1x32xf32>
    %c0_5 = arith.constant 0 : index
    %c0_6 = arith.constant 0 : index
    %5 = vector.load %arg5[%c0_5, %c0_6] : memref<2x8xf32, #tpu.memory_space<vmem>>, vector<2x8xf32>
    %6 = vector.shape_cast %4 : vector<1x32xf32> to vector<1x1x32xf32>
    %7 = vector.broadcast %6 : vector<1x1x32xf32> to vector<2x8x32xf32>
    %8 = arith.mulf %3, %7 : vector<2x8x32xf32>
    %cst = arith.constant dense<0.000000e+00> : vector<2x8xf32>
    %9 = vector.multi_reduction <add>, %8, %cst [2] : vector<2x8x32xf32> to vector<2x8xf32>
    %10 = arith.addf %5, %9 : vector<2x8xf32>
    %c0_7 = arith.constant 0 : index
    %c0_8 = arith.constant 0 : index
    %11 = vector.load %arg5[%c0_7, %c0_8] : memref<2x8xf32, #tpu.memory_space<vmem>>, vector<2x8xf32>
    tpu.vector_store %arg5[%c0_7, %c0_8], %10 {strides = array<i32>} : memref<2x8xf32, #tpu.memory_space<vmem>>, vector<2x8xf32>,
    %c0_i32_9 = arith.constant 0 : i32
    %12 = arith.cmpi eq, %arg1, %c0_i32_9 : i32
    %13 = arith.extui %12 : i1 to i32
    %c0_i32_10 = arith.constant 0 : i32
    %14 = arith.cmpi ne, %13, %c0_i32_10 : i32
    scf.if %14 {
      %c0_11 = arith.constant 0 : index
      %c0_12 = arith.constant 0 : index
      %15 = vector.load %arg5[%c0_11, %c0_12] : memref<2x8xf32, #tpu.memory_space<vmem>>, vector<2x8xf32>
      %cst_13 = arith.constant dense<0xFF800000> : vector<2xf32>
      %16 = vector.multi_reduction <maximumf>, %15, %cst_13 [1] : vector<2x8xf32> to vector<2xf32>
      %17 = vector.shape_cast %16 : vector<2xf32> to vector<2x1xf32>
      %18 = vector.broadcast %17 : vector<2x1xf32> to vector<2x8xf32>
      %19 = arith.subf %15, %18 : vector<2x8xf32>
      %20 = math.exp %19 : vector<2x8xf32>
      %cst_14 = arith.constant dense<0.000000e+00> : vector<2xf32>
      %21 = vector.multi_reduction <add>, %20, %cst_14 [1] : vector<2x8xf32> to vector<2xf32>
      %22 = vector.shape_cast %21 : vector<2xf32> to vector<2x1xf32>
      %23 = vector.broadcast %22 : vector<2x1xf32> to vector<2x8xf32>
      %24 = arith.divf %20, %23 : vector<2x8xf32>
      %c0_15 = arith.constant 0 : index
      %c0_16 = arith.constant 0 : index
      %25 = vector.load %arg4[%c0_15, %c0_16] : memref<2x8xf32, #tpu.memory_space<vmem>>, vector<2x8xf32>
      tpu.vector_store %arg4[%c0_15, %c0_16], %24 {strides = array<i32>} : memref<2x8xf32, #tpu.memory_space<vmem>>, vector<2x8xf32>,
    } else {
    }
    return
  }
  func.func @transform_0(%arg0: i32, %arg1: i32) -> (i32, i32, i32) {
    %c0_i32 = arith.constant 0 : i32
    %c0_i32_0 = arith.constant 0 : i32
    return %arg0, %c0_i32, %arg1 : i32, i32, i32
  }
  func.func @transform_1(%arg0: i32, %arg1: i32) -> (i32, i32) {
    %c0_i32 = arith.constant 0 : i32
    %c0_i32_0 = arith.constant 0 : i32
    return %c0_i32, %arg1 : i32, i32
  }
  func.func @transform_2(%arg0: i32, %arg1: i32) -> (i32, i32) {
    %c0_i32 = arith.constant 0 : i32
    %c0_i32_0 = arith.constant 0 : i32
    return %arg0, %c0_i32 : i32, i32
  }
}

</mosaic_0001>

<llo_original>
// kernel: tpu_custom_call.1
$region0: #{tpu_custom_call.1}
  #allocation0 [shape = 'u32[]', space=smem, size = 0x4, offset = 0x4, fixed_abs, tag = 'smem constant byte address 0x4 - core index']
  #allocation1 [shape = 'u32[144,128]{1,0:T(1,128)}', space=vmem, size = 0x12000, scoped, tag = 'internal scratch']
  #allocation2 [shape = 'f32[2,8]{1,0:T(2,128)}', space=vmem, size = 0x400, scoped, tag = 'scratch operand']
  %s0 = inlined_call_operand.hbm [shape: f32[2,8,32], index: 0, kind: input, shape index: {}]
  %s1 = inlined_call_operand.vmem [shape: f32[1,32], index: 1, kind: input, shape index: {}]
  %s2 = inlined_call_operand.hbm [shape: f32[2,8], index: 2, kind: output, shape index: {}]
  %s3 = sld [smem:[#allocation0]]
  $region30: #{tpu_custom_call.1} parent=0
    _
  %s5 = ssub.s32 1, %s3
  %s6 = scalar_select 0, %s5, %s3
  $region1: #{tpu_custom_call.1} parent=0
    #allocation3 [shape = 'u8[8192]{0}', space=vmem, size = 0x2000, scoped, tag = 'input window, operand 0, single buffered']
    #allocation4 [shape = 's32[1]{0}', space=sflag, size = 0x4, scoped, tag = 'scoped memory for tpu_custom_call.1']
    #allocation5 [shape = 's32[1]{0}', space=sflag, size = 0x4, scoped, tag = 'scoped memory for tpu_custom_call.1']
    #allocation6 [shape = 'u8[1024]{0}', space=vmem, size = 0x400, scoped, tag = 'output window, operand 0, single buffered']
    %7 = vsyncpa [#allocation4], 0
    %8 = vsyncpa [#allocation5], 0
    // Predicated region
    $region2: #{tpu_custom_call.1} parent=1 // pred_check
      _
    $region3: #{tpu_custom_call.1} parent=1 // pred_check_branch
      %10 = sbr.rel (0) target = $region5
    $region4: #{tpu_custom_call.1} parent=1 // pred_region
      %s12 = ssub.s32 256, 256
      %13 = vsyncadd [#allocation4], %s12
      %s14 = sshll.u32 [#allocation3], 4
      %s15 = int_to_ptr.vmem [resolvable:$true] %s14
      %20 = dma.hbm_to_vmem [thread:$0]  %s0, 256, %s15, [#allocation4], 128, 128, 8
    $region5: #{tpu_custom_call.1} parent=1 // pred_fallthru
      _
    // Predicated region
    $region6: #{tpu_custom_call.1} parent=1 // pred_check
      _
    $region7: #{tpu_custom_call.1} parent=1 // pred_check_branch
      %22 = sbr.rel (0) target = $region9
    $region8: #{tpu_custom_call.1} parent=1 // pred_region
      _
    $region9: #{tpu_custom_call.1} parent=1 // pred_fallthru
      _
    // Predicated region
    $region10: #{tpu_custom_call.1} parent=1 // pred_check
      _
    $region11: #{tpu_custom_call.1} parent=1 // pred_check_branch
      %24 = sbr.rel (0) target = $region13
    $region12: #{tpu_custom_call.1} parent=1 // pred_region
      %25 = dma.done [#allocation4], 256
    $region13: #{tpu_custom_call.1} parent=1 // pred_fallthru
      _
    %p26 = scmp.eq.s32.totalorder 0, 0
    // Predicated region
    $region14: #{tpu_custom_call.1} parent=1 // pred_check
      %p27 = pneg %p26
    $region15: #{tpu_custom_call.1} parent=1 // pred_check_branch
      %29 = sbr.rel (%p27) target = $region17
    $region16: #{tpu_custom_call.1} parent=1 // pred_region
      %vm30 = vcmask 58368
      %31 = vst.msk [vmem:[#allocation2] sm:$0x3] %vm30, 0.0
    $region17: #{tpu_custom_call.1} parent=1 // pred_fallthru
      _
    %v32 = vld [vmem:[#allocation3] sm:$0xff]
    %v33 = vld [vmem:[#allocation3 + $0x8] sm:$0xff]
    %v34 = vld [vmem:[%s1] sm:$0x1]
    %v35 = vld [vmem:[#allocation2] sm:$0x3]
    %v37 = vlaneseq
    %v38 = vshrl.u32 %v37, 7
    %v39 = vsub.s32 0, %v38
    %v40 = vrot.slane %v34, %v39
    %v42 = vmul.f32 %v32, %v40
    %v43 = vmul.f32 %v33, %v40
    %vm44 = vcmask 261120
    %v45 = vsel %vm44, %v42, 0.0
    %46 = vadd.xlane.f32.xlu0 %v45
    %v47 = vpop.xlane.xlu0 %46
    %v48 = vsel %vm44, %v43, 0.0
    %49 = vadd.xlane.f32.xlu0 %v48
    %v50 = vpop.xlane.xlu0 %49
    %v53 = vlaneseq
    %v54 = vand.u32 %v53, 127
    %v55 = vlaneseq
    %v56 = vshrl.u32 %v55, 7
    %v57 = vsub.s32 %v54, %v56
    %v58 = vrot.slane %v47, %v57
    %v59 = vlaneseq
    %v60 = vshrl.u32 %v59, 7
    %v61 = vsub.s32 %v54, %v60
    %v62 = vrot.slane %v50, %v61
    %vm63 = vcmask 1041409
    %v64 = vsel %vm63, %v62, %v58
    %v66 = vadd.f32 %v35, %v64
    %vm67 = vcmask 58368
    %68 = vst.msk [vmem:[#allocation2] sm:$0x3] %vm67, %v66
    // Predicated region
    $region18: #{tpu_custom_call.1} parent=1 // pred_check
      %p69 = pneg %p26
    $region19: #{tpu_custom_call.1} parent=1 // pred_check_branch
      %71 = sbr.rel (%p69) target = $region21
    $region20: #{tpu_custom_call.1} parent=1 // pred_region
      %v72 = vld [vmem:[#allocation2] sm:$0x3]
      %v73 = vsel %vm67, %v72, -inf
      %74 = vmax.xlane.f32.xlu0 %v73
      %v75 = vpop.xlane.xlu0 %74
      %v76 = vsub.f32 %v72, %v75
      %v77 = vmul.f32 %v76, 1.442695
      %v78 = vpow.pop %v77
      %v79 = vsel %vm67, %v78, 0.0
      %80 = vadd.xlane.f32.xlu0 %v79
      %v81 = vpop.xlane.xlu0 %80
      %v82 = vrcp.pop %v81
      %v83 = vmul.f32 %v78, %v82
      %84 = vst.msk [vmem:[#allocation6] sm:$0x3] %vm67, %v83
    $region21: #{tpu_custom_call.1} parent=1 // pred_fallthru
      _
    // Predicated region
    $region22: #{tpu_custom_call.1} parent=1 // pred_check
      _
    $region23: #{tpu_custom_call.1} parent=1 // pred_check_branch
      %86 = sbr.rel (0) target = $region25
    $region24: #{tpu_custom_call.1} parent=1 // pred_region
      %s88 = ssub.s32 32, 32
      %89 = vsyncadd [#allocation5], %s88
      %s91 = sshll.u32 [#allocation6], 4
      %s92 = int_to_ptr.vmem [resolvable:$true] %s91
      %94 = dma.vmem_to_hbm [thread:$0]  %s92, 32, %s2, [#allocation5]
    $region25: #{tpu_custom_call.1} parent=1 // pred_fallthru
      _
    // Predicated region
    $region26: #{tpu_custom_call.1} parent=1 // pred_check
      _
    $region27: #{tpu_custom_call.1} parent=1 // pred_check_branch
      %96 = sbr.rel (0) target = $region29
    $region28: #{tpu_custom_call.1} parent=1 // pred_region
      %97 = dma.done [#allocation5], 32
    $region29: #{tpu_custom_call.1} parent=1 // pred_fallthru
      _
    %98 = vsyncpa [#allocation4], 1
    %99 = vsyncpa [#allocation5], 1

</llo_original>
